<compile_context>
chip_gen: v5e
topology: v5e:2x2
jax: 0.10.0
libtpu: 0.0.40
codegen_flags: <defaults>
</compile_context>

<pallas_src>
import math
import jax
import jax.numpy as jnp
from jax.experimental import pallas as pl
from jax.experimental.pallas import tpu as pltpu

# ------------------------- model hyper-params -------------------------
B = 2          # batch
S = 8          # sequence length
D = 32         # model size (== EncoderLayer.size)
H = 4          # attention heads
DK = D // H    # per-head dim
DFF = 64       # feed-forward hidden size
EPS = 1e-6

# ------------------- packed parameter-slab row layout -------------------
LANES = 128
R_WQKV = 0                 # rows [0, D)        cols [0, 3D)   fused QKV weight
R_W1 = D                   # rows [D, 2D)       cols [0, DFF)  FF weight 1
R_W2 = 2 * D               # rows [2D, 2D+DFF)  cols [0, D)    FF weight 2
R_WO = 2 * D + DFF         # rows [.., ..+D)    cols [0, D)    attn out-proj weight
R_VEC = R_WO + D           # 8 rows of packed vectors:
#   +0: bqkv (3D)  +1: b1 (DFF)  +2: ln1_a  +3: ln1_b  +4: ln2_a  +5: ln2_b  +6: bo  +7: b2
N_ROWS = R_VEC + 8         # 168


def encoder_layer_kernel(x_ref, mask_ref, params_ref, out_ref, ctx_scratch):
    # ---- load & fold batch into the sublane axis ----
    x = x_ref[...].reshape(B * S, D)                       # (B*S, D) f32
    mask = mask_ref[...]                                   # (B, 1, S), 1 = keep

    # ---- unpack the single parameter slab (static slices, no extra DMAs) ----
    wqkv = params_ref[R_WQKV:R_WQKV + D, 0:3 * D]          # (D, 3D)
    w1 = params_ref[R_W1:R_W1 + D, 0:DFF]                  # (D, DFF)
    w2 = params_ref[R_W2:R_W2 + DFF, 0:D]                  # (DFF, D)
    wo = params_ref[R_WO:R_WO + D, 0:D]                    # (D, D)
    vecs = params_ref[R_VEC:R_VEC + 8, :]                  # (8, 128)
    bqkv = vecs[0:1, 0:3 * D]
    b1 = vecs[1:2, 0:DFF]
    ln1_a, ln1_b = vecs[2:3, 0:D], vecs[3:4, 0:D]
    ln2_a, ln2_b = vecs[4:5, 0:D], vecs[5:6, 0:D]
    bo, b2 = vecs[6:7, 0:D], vecs[7:8, 0:D]

    def layer_norm(h, a, b):                               # h: (B*S, D)
        mean = jnp.mean(h, axis=-1, keepdims=True)
        cent = h - mean
        var = jnp.sum(cent * cent, axis=-1, keepdims=True) * (1.0 / (D - 1))
        std = jnp.sqrt(var)                                # torch unbiased std
        return a * cent * pl.reciprocal(std + EPS, approx=False) + b

    # ---------------- sublayer 0: multi-head self-attention ----------------
    h = layer_norm(x, ln1_a, ln1_b)                                       # (B*S, D)
    qkv = jnp.dot(h, wqkv, preferred_element_type=jnp.float32) + bqkv     # (B*S, 3D)
    qkv = qkv.reshape(B, S, 3 * D)

    # Fuse heads into the einsum batch axis (order = (head, batch)) with
    # major-axis concatenates: ONE batched scores matmul, ONE softmax chain
    # and ONE ctx matmul cover all H*B (query, key) blocks.
    q_hb = jnp.concatenate(
        [qkv[:, :, hh * DK:(hh + 1) * DK] for hh in range(H)], axis=0)             # (H*B, S, DK)
    k_hb = jnp.concatenate(
        [qkv[:, :, D + hh * DK:D + (hh + 1) * DK] for hh in range(H)], axis=0)      # (H*B, S, DK)
    v_hb = jnp.concatenate(
        [qkv[:, :, 2 * D + hh * DK:2 * D + (hh + 1) * DK] for hh in range(H)], axis=0)

    scale = 1.0 / math.sqrt(DK)
    scores = jnp.einsum('bqd,bkd->bqk', q_hb, k_hb,
                        preferred_element_type=jnp.float32) * scale                 # (H*B, S, S)
    keep = jnp.concatenate([mask] * H, axis=0)             # (H*B, 1, S), order (h, b)
    scores = jnp.where(keep == 0.0, -1e9, scores)          # == masked_fill(mask==0, -1e9)
    # NOTE: a fully-masked key row would give a 0/0 softmax, exactly like the
    # PyTorch reference; no guard added since the reference has none.
    scores = scores - jnp.max(scores, axis=-1, keepdims=True)
    p = jnp.exp(scores)
    p = p * pl.reciprocal(jnp.sum(p, axis=-1, keepdims=True), approx=False)
    ctx = jnp.einsum('bqk,bkd->bqd', p, v_hb,
                     preferred_element_type=jnp.float32)                            # (H*B, S, DK)

    # Reassemble heads head-major on the lane axis (simple masked sub-slice
    # stores into VMEM scratch) and apply ONE output projection (single
    # K = D MXU push instead of four K = DK pushes + accumulates).
    for hh in range(H):
        ctx_scratch[:, hh * DK:(hh + 1) * DK] = ctx[hh * B:(hh + 1) * B].reshape(B * S, DK)
    attn = jnp.dot(ctx_scratch[...], wo, preferred_element_type=jnp.float32) + bo
    x1 = x + attn                                          # residual (dropout = identity)

    # ---------------- sublayer 1: position-wise feed forward ----------------
    h2 = layer_norm(x1, ln2_a, ln2_b)
    ff = jnp.dot(h2, w1, preferred_element_type=jnp.float32) + b1
    ff = jnp.maximum(ff, 0.0)                              # ReLU
    ff = jnp.dot(ff, w2, preferred_element_type=jnp.float32) + b2

    out_ref[...] = (x1 + ff).reshape(B, S, D)              # single lane-dense store
    # TODO(synk): dropout is identity (eval mode); training-mode dropout would need pltpu PRNG.


def encoder_layer(x, mask, params_slab):
    # Grid-less: the whole problem (a few tens of KiB) runs in one invocation
    # with full-array VMEM blocks (default BlockSpecs) -> 3 operand DMAs total.
    return pl.pallas_call(
        encoder_layer_kernel,
        out_shape=jax.ShapeDtypeStruct((B, S, D), jnp.float32),
        scratch_shapes=[pltpu.VMEM((B * S, D), jnp.float32)],
    )(x, mask, params_slab)


def init_params(key):
    ks = jax.random.split(key, 6)
    scale = 0.1
    wq = scale * jax.random.normal(ks[0], (D, D), jnp.float32)
    wk = scale * jax.random.normal(ks[1], (D, D), jnp.float32)
    wv = scale * jax.random.normal(ks[2], (D, D), jnp.float32)
    wo = scale * jax.random.normal(ks[3], (D, D), jnp.float32)
    w1 = scale * jax.random.normal(ks[4], (D, DFF), jnp.float32)
    w2 = scale * jax.random.normal(ks[5], (DFF, D), jnp.float32)

    slab = jnp.zeros((N_ROWS, LANES), jnp.float32)
    slab = slab.at[R_WQKV:R_WQKV + D, 0:3 * D].set(jnp.concatenate([wq, wk, wv], axis=1))
    slab = slab.at[R_W1:R_W1 + D, 0:DFF].set(w1)
    slab = slab.at[R_W2:R_W2 + DFF, 0:D].set(w2)
    slab = slab.at[R_WO:R_WO + D, 0:D].set(wo)
    # bias rows (bqkv, b1, bo, b2) stay zero; LayerNorm scales are ones:
    slab = slab.at[R_VEC + 2, 0:D].set(1.0)   # ln1_a
    slab = slab.at[R_VEC + 4, 0:D].set(1.0)   # ln2_a
    return slab


if __name__ == "__main__":
    key = jax.random.PRNGKey(0)
    kx, kp = jax.random.split(key)

    x = jax.random.normal(kx, (B, S, D), jnp.float32)
    # mask: batch 0 fully valid; batch 1 has last 2 key positions masked out.
    mask = jnp.ones((B, 1, S), jnp.float32)
    mask = mask.at[1, 0, -2:].set(0.0)

    params_slab = init_params(kp)

    out = jax.block_until_ready(encoder_layer(x, mask, params_slab))
    assert out.shape == (B, S, D)
    assert bool(jnp.all(jnp.isfinite(out)))
    print("KERNEL_OK")
</pallas_src>

<mosaic_0001>
module attributes {stable_mosaic.version = 11 : i64} {
  func.func @encoder_layer_kernel(%arg0: memref<2x8x32xf32, #tpu.memory_space<vmem>>, %arg1: memref<2x1x8xf32, #tpu.memory_space<vmem>>, %arg2: memref<168x128xf32, #tpu.memory_space<vmem>>, %arg3: memref<2x8x32xf32, #tpu.memory_space<vmem>>, %arg4: memref<16x32xf32, #tpu.memory_space<vmem>>) attributes {dimension_semantics = [], scalar_prefetch = 0 : i64, scratch_operands = 1 : i64, tpu.core_type = #tpu.core_type<tc>} {
    %c0 = arith.constant 0 : index
    %c0_0 = arith.constant 0 : index
    %c0_1 = arith.constant 0 : index
    %0 = vector.load %arg0[%c0, %c0_0, %c0_1] : memref<2x8x32xf32, #tpu.memory_space<vmem>>, vector<2x8x32xf32>
    %1 = vector.shape_cast %0 : vector<2x8x32xf32> to vector<16x32xf32>
    %c0_2 = arith.constant 0 : index
    %c0_3 = arith.constant 0 : index
    %c0_4 = arith.constant 0 : index
    %2 = vector.load %arg1[%c0_2, %c0_3, %c0_4] : memref<2x1x8xf32, #tpu.memory_space<vmem>>, vector<2x1x8xf32>
    %c0_5 = arith.constant 0 : index
    %c0_6 = arith.constant 0 : index
    %3 = vector.load %arg2[%c0_5, %c0_6] : memref<168x128xf32, #tpu.memory_space<vmem>>, vector<32x96xf32>
    %c32 = arith.constant 32 : index
    %c0_7 = arith.constant 0 : index
    %4 = vector.load %arg2[%c32, %c0_7] : memref<168x128xf32, #tpu.memory_space<vmem>>, vector<32x64xf32>
    %c64 = arith.constant 64 : index
    %c0_8 = arith.constant 0 : index
    %5 = vector.load %arg2[%c64, %c0_8] : memref<168x128xf32, #tpu.memory_space<vmem>>, vector<64x32xf32>
    %c128 = arith.constant 128 : index
    %c0_9 = arith.constant 0 : index
    %6 = vector.load %arg2[%c128, %c0_9] : memref<168x128xf32, #tpu.memory_space<vmem>>, vector<32x32xf32>
    %c160 = arith.constant 160 : index
    %c0_10 = arith.constant 0 : index
    %7 = vector.load %arg2[%c160, %c0_10] : memref<168x128xf32, #tpu.memory_space<vmem>>, vector<8x128xf32>
    %8 = vector.extract_strided_slice %7 {offsets = [0, 0], sizes = [1, 96], strides = [1, 1]} : vector<8x128xf32> to vector<1x96xf32>
    %9 = vector.extract_strided_slice %7 {offsets = [1, 0], sizes = [1, 64], strides = [1, 1]} : vector<8x128xf32> to vector<1x64xf32>
    %10 = vector.extract_strided_slice %7 {offsets = [2, 0], sizes = [1, 32], strides = [1, 1]} : vector<8x128xf32> to vector<1x32xf32>
    %11 = vector.extract_strided_slice %7 {offsets = [3, 0], sizes = [1, 32], strides = [1, 1]} : vector<8x128xf32> to vector<1x32xf32>
    %12 = vector.extract_strided_slice %7 {offsets = [4, 0], sizes = [1, 32], strides = [1, 1]} : vector<8x128xf32> to vector<1x32xf32>
    %13 = vector.extract_strided_slice %7 {offsets = [5, 0], sizes = [1, 32], strides = [1, 1]} : vector<8x128xf32> to vector<1x32xf32>
    %14 = vector.extract_strided_slice %7 {offsets = [6, 0], sizes = [1, 32], strides = [1, 1]} : vector<8x128xf32> to vector<1x32xf32>
    %15 = vector.extract_strided_slice %7 {offsets = [7, 0], sizes = [1, 32], strides = [1, 1]} : vector<8x128xf32> to vector<1x32xf32>
    %cst = arith.constant dense<0.000000e+00> : vector<16xf32>
    %16 = vector.multi_reduction <add>, %1, %cst [1] : vector<16x32xf32> to vector<16xf32>
    %17 = vector.shape_cast %16 : vector<16xf32> to vector<16x1xf32>
    %cst_11 = arith.constant 3.200000e+01 : f32
    %18 = vector.broadcast %cst_11 : f32 to vector<16x1xf32>
    %19 = arith.divf %17, %18 : vector<16x1xf32>
    %20 = vector.broadcast %19 : vector<16x1xf32> to vector<16x32xf32>
    %21 = arith.subf %1, %20 : vector<16x32xf32>
    %22 = arith.mulf %21, %21 : vector<16x32xf32>
    %cst_12 = arith.constant dense<0.000000e+00> : vector<16xf32>
    %23 = vector.multi_reduction <add>, %22, %cst_12 [1] : vector<16x32xf32> to vector<16xf32>
    %24 = vector.shape_cast %23 : vector<16xf32> to vector<16x1xf32>
    %cst_13 = arith.constant 0.0322580636 : f32
    %25 = vector.broadcast %cst_13 : f32 to vector<16x1xf32>
    %26 = arith.mulf %24, %25 : vector<16x1xf32>
    %27 = math.sqrt %26 : vector<16x1xf32>
    %28 = vector.broadcast %10 : vector<1x32xf32> to vector<16x32xf32>
    %29 = arith.mulf %28, %21 : vector<16x32xf32>
    %cst_14 = arith.constant 9.99999997E-7 : f32
    %30 = vector.broadcast %cst_14 : f32 to vector<16x1xf32>
    %31 = arith.addf %27, %30 : vector<16x1xf32>
    %32 = tpu.reciprocal %31 : vector<16x1xf32> -> vector<16x1xf32>
    %33 = vector.broadcast %32 : vector<16x1xf32> to vector<16x32xf32>
    %34 = arith.mulf %29, %33 : vector<16x32xf32>
    %35 = vector.broadcast %11 : vector<1x32xf32> to vector<16x32xf32>
    %36 = arith.addf %34, %35 : vector<16x32xf32>
    %cst_15 = arith.constant dense<0.000000e+00> : vector<16x96xf32>
    %37 = tpu.matmul %36, %3, %cst_15 {dimension_numbers = #tpu.dot_dimension_numbers<[1], [0], [0], [1], [0, 0, 1, 1], [], []>} : vector<16x32xf32>, vector<32x96xf32>, vector<16x96xf32> -> vector<16x96xf32>
    %38 = vector.broadcast %8 : vector<1x96xf32> to vector<16x96xf32>
    %39 = arith.addf %37, %38 : vector<16x96xf32>
    %40 = vector.shape_cast %39 : vector<16x96xf32> to vector<2x8x96xf32>
    %41 = vector.extract_strided_slice %40 {offsets = [0, 0, 0], sizes = [2, 8, 8], strides = [1, 1, 1]} : vector<2x8x96xf32> to vector<2x8x8xf32>
    %42 = vector.extract_strided_slice %40 {offsets = [0, 0, 8], sizes = [2, 8, 8], strides = [1, 1, 1]} : vector<2x8x96xf32> to vector<2x8x8xf32>
    %43 = vector.extract_strided_slice %40 {offsets = [0, 0, 16], sizes = [2, 8, 8], strides = [1, 1, 1]} : vector<2x8x96xf32> to vector<2x8x8xf32>
    %44 = vector.extract_strided_slice %40 {offsets = [0, 0, 24], sizes = [2, 8, 8], strides = [1, 1, 1]} : vector<2x8x96xf32> to vector<2x8x8xf32>
    %45 = tpu.concatenate %41, %42, %43, %44 in 0 : vector<2x8x8xf32>, vector<2x8x8xf32>, vector<2x8x8xf32>, vector<2x8x8xf32> -> vector<8x8x8xf32>
    %46 = vector.extract_strided_slice %40 {offsets = [0, 0, 32], sizes = [2, 8, 8], strides = [1, 1, 1]} : vector<2x8x96xf32> to vector<2x8x8xf32>
    %47 = vector.extract_strided_slice %40 {offsets = [0, 0, 40], sizes = [2, 8, 8], strides = [1, 1, 1]} : vector<2x8x96xf32> to vector<2x8x8xf32>
    %48 = vector.extract_strided_slice %40 {offsets = [0, 0, 48], sizes = [2, 8, 8], strides = [1, 1, 1]} : vector<2x8x96xf32> to vector<2x8x8xf32>
    %49 = vector.extract_strided_slice %40 {offsets = [0, 0, 56], sizes = [2, 8, 8], strides = [1, 1, 1]} : vector<2x8x96xf32> to vector<2x8x8xf32>
    %50 = tpu.concatenate %46, %47, %48, %49 in 0 : vector<2x8x8xf32>, vector<2x8x8xf32>, vector<2x8x8xf32>, vector<2x8x8xf32> -> vector<8x8x8xf32>
    %51 = vector.extract_strided_slice %40 {offsets = [0, 0, 64], sizes = [2, 8, 8], strides = [1, 1, 1]} : vector<2x8x96xf32> to vector<2x8x8xf32>
    %52 = vector.extract_strided_slice %40 {offsets = [0, 0, 72], sizes = [2, 8, 8], strides = [1, 1, 1]} : vector<2x8x96xf32> to vector<2x8x8xf32>
    %53 = vector.extract_strided_slice %40 {offsets = [0, 0, 80], sizes = [2, 8, 8], strides = [1, 1, 1]} : vector<2x8x96xf32> to vector<2x8x8xf32>
    %54 = vector.extract_strided_slice %40 {offsets = [0, 0, 88], sizes = [2, 8, 8], strides = [1, 1, 1]} : vector<2x8x96xf32> to vector<2x8x8xf32>
    %55 = tpu.concatenate %51, %52, %53, %54 in 0 : vector<2x8x8xf32>, vector<2x8x8xf32>, vector<2x8x8xf32>, vector<2x8x8xf32> -> vector<8x8x8xf32>
    "tpu.trace_start"() <{level = 10 : i32, message = "bqd,bkd->bqk"}> : () -> ()
    %cst_16 = arith.constant dense<0.000000e+00> : vector<8x8x8xf32>
    %56 = tpu.matmul %45, %50, %cst_16 {dimension_numbers = #tpu.dot_dimension_numbers<[2], [2], [1], [1], [0, 0, 0, 1, 1, 1], [0], [0]>} : vector<8x8x8xf32>, vector<8x8x8xf32>, vector<8x8x8xf32> -> vector<8x8x8xf32>
    "tpu.trace_stop"() : () -> ()
    %cst_17 = arith.constant 0.353553385 : f32
    %57 = vector.broadcast %cst_17 : f32 to vector<8x8x8xf32>
    %58 = arith.mulf %56, %57 : vector<8x8x8xf32>
    %59 = tpu.concatenate %2, %2, %2, %2 in 0 : vector<2x1x8xf32>, vector<2x1x8xf32>, vector<2x1x8xf32>, vector<2x1x8xf32> -> vector<8x1x8xf32>
    %cst_18 = arith.constant 0.000000e+00 : f32
    %60 = vector.broadcast %cst_18 : f32 to vector<8x1x8xf32>
    %61 = arith.cmpf oeq, %59, %60 : vector<8x1x8xf32>
    %cst_19 = arith.constant -1.000000e+09 : f32
    %62 = vector.shape_cast %61 : vector<8x1x8xi1> to vector<8x1x8xi1>
    %63 = vector.broadcast %62 : vector<8x1x8xi1> to vector<8x8x8xi1>
    %64 = vector.broadcast %cst_19 : f32 to vector<8x8x8xf32>
    %65 = arith.select %63, %64, %58 : vector<8x8x8xi1>, vector<8x8x8xf32>
    %cst_20 = arith.constant dense<0xFF800000> : vector<8x8xf32>
    %66 = vector.multi_reduction <maximumf>, %65, %cst_20 [2] : vector<8x8x8xf32> to vector<8x8xf32>
    %67 = vector.shape_cast %66 : vector<8x8xf32> to vector<8x8x1xf32>
    %68 = vector.broadcast %67 : vector<8x8x1xf32> to vector<8x8x8xf32>
    %69 = arith.subf %65, %68 : vector<8x8x8xf32>
    %70 = math.exp %69 : vector<8x8x8xf32>
    %cst_21 = arith.constant dense<0.000000e+00> : vector<8x8xf32>
    %71 = vector.multi_reduction <add>, %70, %cst_21 [2] : vector<8x8x8xf32> to vector<8x8xf32>
    %72 = vector.shape_cast %71 : vector<8x8xf32> to vector<8x8x1xf32>
    %73 = tpu.reciprocal %72 : vector<8x8x1xf32> -> vector<8x8x1xf32>
    %74 = vector.broadcast %73 : vector<8x8x1xf32> to vector<8x8x8xf32>
    %75 = arith.mulf %70, %74 : vector<8x8x8xf32>
    "tpu.trace_start"() <{level = 10 : i32, message = "bqk,bkd->bqd"}> : () -> ()
    %cst_22 = arith.constant dense<0.000000e+00> : vector<8x8x8xf32>
    %76 = tpu.matmul %75, %55, %cst_22 {dimension_numbers = #tpu.dot_dimension_numbers<[2], [1], [1], [2], [0, 0, 0, 1, 1, 2], [0], [0]>} : vector<8x8x8xf32>, vector<8x8x8xf32>, vector<8x8x8xf32> -> vector<8x8x8xf32>
    "tpu.trace_stop"() : () -> ()
    %77 = vector.extract_strided_slice %76 {offsets = [0, 0, 0], sizes = [2, 8, 8], strides = [1, 1, 1]} : vector<8x8x8xf32> to vector<2x8x8xf32>
    %78 = vector.shape_cast %77 : vector<2x8x8xf32> to vector<16x8xf32>
    %c0_23 = arith.constant 0 : index
    %c0_24 = arith.constant 0 : index
    %79 = vector.load %arg4[%c0_23, %c0_24] : memref<16x32xf32, #tpu.memory_space<vmem>>, vector<16x8xf32>
    tpu.vector_store %arg4[%c0_23, %c0_24], %78 {strides = array<i32>} : memref<16x32xf32, #tpu.memory_space<vmem>>, vector<16x8xf32>,
    %80 = vector.extract_strided_slice %76 {offsets = [2, 0, 0], sizes = [2, 8, 8], strides = [1, 1, 1]} : vector<8x8x8xf32> to vector<2x8x8xf32>
    %81 = vector.shape_cast %80 : vector<2x8x8xf32> to vector<16x8xf32>
    %c0_25 = arith.constant 0 : index
    %c8 = arith.constant 8 : index
    %82 = vector.load %arg4[%c0_25, %c8] : memref<16x32xf32, #tpu.memory_space<vmem>>, vector<16x8xf32>
    tpu.vector_store %arg4[%c0_25, %c8], %81 {strides = array<i32>} : memref<16x32xf32, #tpu.memory_space<vmem>>, vector<16x8xf32>,
    %83 = vector.extract_strided_slice %76 {offsets = [4, 0, 0], sizes = [2, 8, 8], strides = [1, 1, 1]} : vector<8x8x8xf32> to vector<2x8x8xf32>
    %84 = vector.shape_cast %83 : vector<2x8x8xf32> to vector<16x8xf32>
    %c0_26 = arith.constant 0 : index
    %c16 = arith.constant 16 : index
    %85 = vector.load %arg4[%c0_26, %c16] : memref<16x32xf32, #tpu.memory_space<vmem>>, vector<16x8xf32>
    tpu.vector_store %arg4[%c0_26, %c16], %84 {strides = array<i32>} : memref<16x32xf32, #tpu.memory_space<vmem>>, vector<16x8xf32>,
    %86 = vector.extract_strided_slice %76 {offsets = [6, 0, 0], sizes = [2, 8, 8], strides = [1, 1, 1]} : vector<8x8x8xf32> to vector<2x8x8xf32>
    %87 = vector.shape_cast %86 : vector<2x8x8xf32> to vector<16x8xf32>
    %c0_27 = arith.constant 0 : index
    %c24 = arith.constant 24 : index
    %88 = vector.load %arg4[%c0_27, %c24] : memref<16x32xf32, #tpu.memory_space<vmem>>, vector<16x8xf32>
    tpu.vector_store %arg4[%c0_27, %c24], %87 {strides = array<i32>} : memref<16x32xf32, #tpu.memory_space<vmem>>, vector<16x8xf32>,
    %c0_28 = arith.constant 0 : index
    %c0_29 = arith.constant 0 : index
    %89 = vector.load %arg4[%c0_28, %c0_29] : memref<16x32xf32, #tpu.memory_space<vmem>>, vector<16x32xf32>
    %cst_30 = arith.constant dense<0.000000e+00> : vector<16x32xf32>
    %90 = tpu.matmul %89, %6, %cst_30 {dimension_numbers = #tpu.dot_dimension_numbers<[1], [0], [0], [1], [0, 0, 1, 1], [], []>} : vector<16x32xf32>, vector<32x32xf32>, vector<16x32xf32> -> vector<16x32xf32>
    %91 = vector.broadcast %14 : vector<1x32xf32> to vector<16x32xf32>
    %92 = arith.addf %90, %91 : vector<16x32xf32>
    %93 = arith.addf %1, %92 : vector<16x32xf32>
    %cst_31 = arith.constant dense<0.000000e+00> : vector<16xf32>
    %94 = vector.multi_reduction <add>, %93, %cst_31 [1] : vector<16x32xf32> to vector<16xf32>
    %95 = vector.shape_cast %94 : vector<16xf32> to vector<16x1xf32>
    %cst_32 = arith.constant 3.200000e+01 : f32
    %96 = vector.broadcast %cst_32 : f32 to vector<16x1xf32>
    %97 = arith.divf %95, %96 : vector<16x1xf32>
    %98 = vector.broadcast %97 : vector<16x1xf32> to vector<16x32xf32>
    %99 = arith.subf %93, %98 : vector<16x32xf32>
    %100 = arith.mulf %99, %99 : vector<16x32xf32>
    %cst_33 = arith.constant dense<0.000000e+00> : vector<16xf32>
    %101 = vector.multi_reduction <add>, %100, %cst_33 [1] : vector<16x32xf32> to vector<16xf32>
    %102 = vector.shape_cast %101 : vector<16xf32> to vector<16x1xf32>
    %cst_34 = arith.constant 0.0322580636 : f32
    %103 = vector.broadcast %cst_34 : f32 to vector<16x1xf32>
    %104 = arith.mulf %102, %103 : vector<16x1xf32>
    %105 = math.sqrt %104 : vector<16x1xf32>
    %106 = vector.broadcast %12 : vector<1x32xf32> to vector<16x32xf32>
    %107 = arith.mulf %106, %99 : vector<16x32xf32>
    %cst_35 = arith.constant 9.99999997E-7 : f32
    %108 = vector.broadcast %cst_35 : f32 to vector<16x1xf32>
    %109 = arith.addf %105, %108 : vector<16x1xf32>
    %110 = tpu.reciprocal %109 : vector<16x1xf32> -> vector<16x1xf32>
    %111 = vector.broadcast %110 : vector<16x1xf32> to vector<16x32xf32>
    %112 = arith.mulf %107, %111 : vector<16x32xf32>
    %113 = vector.broadcast %13 : vector<1x32xf32> to vector<16x32xf32>
    %114 = arith.addf %112, %113 : vector<16x32xf32>
    %cst_36 = arith.constant dense<0.000000e+00> : vector<16x64xf32>
    %115 = tpu.matmul %114, %4, %cst_36 {dimension_numbers = #tpu.dot_dimension_numbers<[1], [0], [0], [1], [0, 0, 1, 1], [], []>} : vector<16x32xf32>, vector<32x64xf32>, vector<16x64xf32> -> vector<16x64xf32>
    %116 = vector.broadcast %9 : vector<1x64xf32> to vector<16x64xf32>
    %117 = arith.addf %115, %116 : vector<16x64xf32>
    %cst_37 = arith.constant 0.000000e+00 : f32
    %118 = vector.broadcast %cst_37 : f32 to vector<16x64xf32>
    %119 = arith.maximumf %117, %118 : vector<16x64xf32>
    %cst_38 = arith.constant dense<0.000000e+00> : vector<16x32xf32>
    %120 = tpu.matmul %119, %5, %cst_38 {dimension_numbers = #tpu.dot_dimension_numbers<[1], [0], [0], [1], [0, 0, 1, 1], [], []>} : vector<16x64xf32>, vector<64x32xf32>, vector<16x32xf32> -> vector<16x32xf32>
    %121 = vector.broadcast %15 : vector<1x32xf32> to vector<16x32xf32>
    %122 = arith.addf %120, %121 : vector<16x32xf32>
    %123 = arith.addf %93, %122 : vector<16x32xf32>
    %124 = vector.shape_cast %123 : vector<16x32xf32> to vector<2x8x32xf32>
    %c0_39 = arith.constant 0 : index
    %c0_40 = arith.constant 0 : index
    %c0_41 = arith.constant 0 : index
    %125 = vector.load %arg3[%c0_39, %c0_40, %c0_41] : memref<2x8x32xf32, #tpu.memory_space<vmem>>, vector<2x8x32xf32>
    tpu.vector_store %arg3[%c0_39, %c0_40, %c0_41], %124 {strides = array<i32>} : memref<2x8x32xf32, #tpu.memory_space<vmem>>, vector<2x8x32xf32>,
    return
  }
}

</mosaic_0001>

<llo_original>
// kernel: tpu_custom_call.1
$region0: #{tpu_custom_call.1}
  #allocation0 [shape = 'u32[]', space=smem, size = 0x4, offset = 0x4, fixed_abs, tag = 'smem constant byte address 0x4 - core index']
  #allocation1 [shape = 'u32[72,128]{1,0:T(1,128)}', space=vmem, size = 0x9000, scoped, tag = 'internal scratch']
  #allocation2 [shape = 'f32[16,32]{1,0:T(8,128)}', space=vmem, size = 0x2000, scoped, tag = 'scratch operand']
  %s0 = inlined_call_operand.hbm [shape: f32[2,8,32], index: 0, kind: input, shape index: {}]
  %s1 = inlined_call_operand.hbm [shape: f32[2,1,8], index: 1, kind: input, shape index: {}]
  %s2 = inlined_call_operand.hbm [shape: f32[168,128], index: 2, kind: input, shape index: {}]
  %s3 = inlined_call_operand.hbm [shape: f32[2,8,32], index: 3, kind: output, shape index: {}]
  %s4 = sld [smem:[#allocation0]]
  $region34: #{tpu_custom_call.1} parent=0
    _
  %s6 = ssub.s32 1, %s4
  %s7 = scalar_select 0, %s6, %s4
  $region1: #{tpu_custom_call.1} parent=0
    #allocation3 [shape = 'u8[8192]{0}', space=vmem, size = 0x2000, scoped, tag = 'input window, operand 0, single buffered']
    #allocation4 [shape = 's32[1]{0}', space=sflag, size = 0x4, scoped, tag = 'scoped memory for tpu_custom_call.1']
    #allocation5 [shape = 's32[1]{0}', space=sflag, size = 0x4, scoped, tag = 'scoped memory for tpu_custom_call.1']
    #allocation6 [shape = 'u8[1024]{0}', space=vmem, size = 0x400, scoped, tag = 'input window, operand 1, single buffered']
    #allocation7 [shape = 's32[1]{0}', space=sflag, size = 0x4, scoped, tag = 'scoped memory for tpu_custom_call.1']
    #allocation8 [shape = 'u8[86016]{0}', space=vmem, size = 0x15000, scoped, tag = 'input window, operand 2, single buffered']
    #allocation9 [shape = 'u8[8192]{0}', space=vmem, size = 0x2000, scoped, tag = 'output window, operand 0, single buffered']
    %8 = vsyncpa [#allocation4], 0
    %9 = vsyncpa [#allocation7], 0
    %10 = vsyncpa [#allocation5], 0
    // Predicated region
    $region2: #{tpu_custom_call.1} parent=1 // pred_check
      _
    $region3: #{tpu_custom_call.1} parent=1 // pred_check_branch
      %12 = sbr.rel (0) target = $region5
    $region4: #{tpu_custom_call.1} parent=1 // pred_region
      %14 = vsyncadd [#allocation4], 0
      %s15 = sshll.u32 %s0, 4
      %s16 = int_to_ptr.hbm [resolvable:$true] %s15
      %s17 = sshll.u32 [#allocation3], 4
      %s18 = int_to_ptr.vmem [resolvable:$true] %s17
      %23 = dma.hbm_to_vmem [thread:$0]  %s16, 256, %s18, [#allocation4], 128, 128, 8
    $region5: #{tpu_custom_call.1} parent=1 // pred_fallthru
      _
    // Predicated region
    $region6: #{tpu_custom_call.1} parent=1 // pred_check
      _
    $region7: #{tpu_custom_call.1} parent=1 // pred_check_branch
      %25 = sbr.rel (0) target = $region9
    $region8: #{tpu_custom_call.1} parent=1 // pred_region
      %27 = vsyncadd [#allocation7], 0
      %s28 = sshll.u32 %s1, 4
      %s29 = int_to_ptr.hbm [resolvable:$true] %s28
      %s30 = sshll.u32 [#allocation6], 4
      %s31 = int_to_ptr.vmem [resolvable:$true] %s30
      %36 = dma.hbm_to_vmem [thread:$0]  %s29, 32, %s31, [#allocation7], 16, 16, 1
    $region9: #{tpu_custom_call.1} parent=1 // pred_fallthru
      _
    // Predicated region
    $region10: #{tpu_custom_call.1} parent=1 // pred_check
      _
    $region11: #{tpu_custom_call.1} parent=1 // pred_check_branch
      %38 = sbr.rel (0) target = $region13
    $region12: #{tpu_custom_call.1} parent=1 // pred_region
      %40 = vsyncadd [#allocation7], 0
      %s41 = sshll.u32 %s2, 4
      %s42 = int_to_ptr.hbm [resolvable:$true] %s41
      %s43 = sshll.u32 [#allocation8], 4
      %s44 = int_to_ptr.vmem [resolvable:$true] %s43
      %49 = dma.hbm_to_vmem [thread:$0]  %s42, 2688, %s44, [#allocation7], 128, 128, 8
    $region13: #{tpu_custom_call.1} parent=1 // pred_fallthru
      _
    // Predicated region
    $region14: #{tpu_custom_call.1} parent=1 // pred_check
      _
    $region15: #{tpu_custom_call.1} parent=1 // pred_check_branch
      %51 = sbr.rel (0) target = $region17
    $region16: #{tpu_custom_call.1} parent=1 // pred_region
      %53 = dma.done [#allocation4], 256
    $region17: #{tpu_custom_call.1} parent=1 // pred_fallthru
      _
    // Predicated region
    $region18: #{tpu_custom_call.1} parent=1 // pred_check
      _
    $region19: #{tpu_custom_call.1} parent=1 // pred_check_branch
      %55 = sbr.rel (0) target = $region21
    $region20: #{tpu_custom_call.1} parent=1 // pred_region
      %57 = dma.done [#allocation7], 32
    $region21: #{tpu_custom_call.1} parent=1 // pred_fallthru
      _
    // Predicated region
    $region22: #{tpu_custom_call.1} parent=1 // pred_check
      _
    $region23: #{tpu_custom_call.1} parent=1 // pred_check_branch
      %59 = sbr.rel (0) target = $region25
    $region24: #{tpu_custom_call.1} parent=1 // pred_region
      %61 = dma.done [#allocation7], 2688
    $region25: #{tpu_custom_call.1} parent=1 // pred_fallthru
      _
    %v62 = vld [vmem:[#allocation3] sm:$0xff]
    %v63 = vld [vmem:[#allocation3 + $0x8] sm:$0xff]
    %v64 = vld [vmem:[#allocation6] sm:$0x1]
    %v65 = vld [vmem:[#allocation6 + $0x1] sm:$0x1]
    %v66 = vld [vmem:[#allocation8] sm:$0xff]
    %v67 = vld [vmem:[#allocation8 + $0x8] sm:$0xff]
    %v68 = vld [vmem:[#allocation8 + $0x10] sm:$0xff]
    %v69 = vld [vmem:[#allocation8 + $0x18] sm:$0xff]
    %v70 = vld [vmem:[#allocation8 + $0x20] sm:$0xff]
    %v71 = vld [vmem:[#allocation8 + $0x28] sm:$0xff]
    %v72 = vld [vmem:[#allocation8 + $0x30] sm:$0xff]
    %v73 = vld [vmem:[#allocation8 + $0x38] sm:$0xff]
    %v74 = vld [vmem:[#allocation8 + $0x40] sm:$0xff]
    %v75 = vld [vmem:[#allocation8 + $0x48] sm:$0xff]
    %v76 = vld [vmem:[#allocation8 + $0x50] sm:$0xff]
    %v77 = vld [vmem:[#allocation8 + $0x58] sm:$0xff]
    %v78 = vld [vmem:[#allocation8 + $0x60] sm:$0xff]
    %v79 = vld [vmem:[#allocation8 + $0x68] sm:$0xff]
    %v80 = vld [vmem:[#allocation8 + $0x70] sm:$0xff]
    %v81 = vld [vmem:[#allocation8 + $0x78] sm:$0xff]
    %v82 = vld [vmem:[#allocation8 + $0x80] sm:$0xff]
    %v83 = vld [vmem:[#allocation8 + $0x88] sm:$0xff]
    %v84 = vld [vmem:[#allocation8 + $0x90] sm:$0xff]
    %v85 = vld [vmem:[#allocation8 + $0x98] sm:$0xff]
    %v86 = vld [vmem:[#allocation8 + $0xa0] sm:$0xff]
    %vm87 = vcmask 261120
    %v88 = vsel %vm87, %v62, 0.0
    %89 = vadd.xlane.f32.xlu0 %v88
    %v90 = vpop.xlane.xlu0 %89
    %v91 = vsel %vm87, %v63, 0.0
    %92 = vadd.xlane.f32.xlu0 %v91
    %v93 = vpop.xlane.xlu0 %92
    %v94 = vrcp.pop 32.0
    %v95 = vmul.f32 32.0, %v94
    %v96 = vsub.f32 1.0, %v95
    %v97 = vmul.f32 %v94, %v96
    %v98 = vadd.f32 %v94, %v97
    %vm99 = vweird.f32 %v94
    %v100 = vsel %vm99, %v94, %v98
    %v101 = vmul.f32 %v90, %v100
    %v102 = vmul.f32 %v93, %v100
    %v103 = vsub.f32 %v62, %v101
    %v104 = vsub.f32 %v63, %v102
    %v105 = vmul.f32 %v103, %v103
    %v106 = vmul.f32 %v104, %v104
    %v107 = vsel %vm87, %v105, 0.0
    %108 = vadd.xlane.f32.xlu0 %v107
    %v109 = vpop.xlane.xlu0 %108
    %v110 = vsel %vm87, %v106, 0.0
    %111 = vadd.xlane.f32.xlu0 %v110
    %v112 = vpop.xlane.xlu0 %111
    %v113 = vmul.f32 %v109, 0.032258064
    %v114 = vmul.f32 %v112, 0.032258064
    %v115 = vrsqrt.pop %v113
    %v116 = vmul.f32 %v115, %v113
    %v117 = vmul.f32 %v116, %v115
    %v118 = vmul.f32 0.5, %v117
    %v119 = vsub.f32 1.5, %v118
    %v120 = vmul.f32 %v115, %v119
    %v121 = vmul.f32 %v113, %v120
    %vm122 = vcmp.eq.f32.partialorder %v113, inf
    %v123 = vsel %vm122, %v113, %v121
    %vm124 = vcmp.eq.f32.partialorder %v113, 0.0
    %v125 = vand.u32 %v113, 2147483648
    %v126 = vsel %vm124, %v125, %v123
    %v127 = vrsqrt.pop %v114
    %v128 = vmul.f32 %v127, %v114
    %v129 = vmul.f32 %v128, %v127
    %v130 = vmul.f32 0.5, %v129
    %v131 = vsub.f32 1.5, %v130
    %v132 = vmul.f32 %v127, %v131
    %v133 = vmul.f32 %v114, %v132
    %vm134 = vcmp.eq.f32.partialorder %v114, inf
    %v135 = vsel %vm134, %v114, %v133
    %vm136 = vcmp.eq.f32.partialorder %v114, 0.0
    %v137 = vand.u32 %v114, 2147483648
    %v138 = vsel %vm136, %v137, %v135
    %v139 = vperm.slane %v86, 2
    %v140 = vmul.f32 %v139, %v103
    %v141 = vmul.f32 %v139, %v104
    %v142 = vadd.f32 %v126, 1e-06
    %v143 = vadd.f32 %v138, 1e-06
    %v144 = vrcp.pop %v142
    %v145 = vmul.f32 %v142, %v144
    %v146 = vsub.f32 1.0, %v145
    %v147 = vmul.f32 %v144, %v146
    %v148 = vadd.f32 %v144, %v147
    %vm149 = vweird.f32 %v142
    %vm150 = vweird.f32 %v144
    %vm151 = vmor %vm149, %vm150
    %v152 = vsel %vm151, %v144, %v148
    %v153 = vand.u32 2147483647, %v142
    %vm154 = vcmp.eq.f32.partialorder %v153, 8.507059e+37
    %v155 = vand.u32 %v142, 2147483648
    %v156 = vor.u32 1.1754944e-38, %v155
    %v157 = vsel %vm154, %v156, %v152
    %v158 = vrcp.pop %v143
    %v159 = vmul.f32 %v143, %v158
    %v160 = vsub.f32 1.0, %v159
    %v161 = vmul.f32 %v158, %v160
    %v162 = vadd.f32 %v158, %v161
    %vm163 = vweird.f32 %v143
    %vm164 = vweird.f32 %v158
    %vm165 = vmor %vm163, %vm164
    %v166 = vsel %vm165, %v158, %v162
    %v167 = vand.u32 2147483647, %v143
    %vm168 = vcmp.eq.f32.partialorder %v167, 8.507059e+37
    %v169 = vand.u32 %v143, 2147483648
    %v170 = vor.u32 1.1754944e-38, %v169
    %v171 = vsel %vm168, %v170, %v166
    %v172 = vmul.f32 %v140, %v157
    %v173 = vmul.f32 %v141, %v171
    %v174 = vperm.slane %v86, 3
    %v175 = vadd.f32 %v172, %v174
    %v176 = vadd.f32 %v173, %v174
    %v177 = vperm.slane %v86, 0
    %v179 = vsel %vm87, %v175, 0
    %v182 = vsel %vm87, %v176, 0
    %184 = vmatpush.msra.mxu0 0.0
    %185 = vmatpush.msra.mxu0 0.0
    %186 = vmatpush.msra.mxu0 0.0
    %187 = vmatpush.msra.mxu0 0.0
    %188 = vmatpush.msra.mxu0 0.0
    %189 = vmatpush.msra.mxu0 0.0
    %190 = vmatpush.msra.mxu0 0.0
    %191 = vmatpush.msra.mxu0 0.0
    %192 = vmatpush.msra.mxu0 0.0
    %193 = vmatpush.msra.mxu0 0.0
    %194 = vmatpush.msra.mxu0 0.0
    %195 = vmatpush.msra.mxu0 0.0
    %196 = vmatpush.msra.mxu0 %v69
    %197 = vmatpush.msra.mxu0 %v68
    %198 = vmatpush.msra.mxu0 %v67
    %199 = vmatpush.msra.mxu0 %v66
    %200 = vmatmul.f32.gmra.mxu0 %v179
    %v201 = vpop.f32.mrf.mxu0
    %v202 = vadd.f32 %v177, %v201
    %203 = vmatmul.f32.gmra.mxu0 %v182
    %v204 = vpop.f32.mrf.mxu0
    %v205 = vadd.f32 %v177, %v204
    %206 = vdwg.mxu0
    %209 = vrot.lane.b32.xlu0 %v202, 120
    %v210 = vpop.permute.xlu0 %209
    %211 = vrot.lane.b32.xlu0 %v205, 120
    %v212 = vpop.permute.xlu0 %211
    %213 = vrot.lane.b32.xlu0 %v202, 112
    %v214 = vpop.permute.xlu0 %213
    %215 = vrot.lane.b32.xlu0 %v205, 112
    %v216 = vpop.permute.xlu0 %215
    %217 = vrot.lane.b32.xlu0 %v202, 104
    %v218 = vpop.permute.xlu0 %217
    %219 = vrot.lane.b32.xlu0 %v205, 104
    %v220 = vpop.permute.xlu0 %219
    %221 = vrot.lane.b32.xlu0 %v202, 96
    %v222 = vpop.permute.xlu0 %221
    %vm223 = vcmask 64512
    %v224 = vsel %vm223, %v202, 0
    %v226 = vsel %vm223, %v222, 0
    %228 = vmatpush.xpose.msra.mxu0 0.0
    %229 = vmatpush.xpose.msra.mxu0 0.0
    %230 = vmatpush.xpose.msra.mxu0 0.0
    %231 = vmatpush.xpose.msra.mxu0 0.0
    %232 = vmatpush.xpose.msra.mxu0 0.0
    %233 = vmatpush.xpose.msra.mxu0 0.0
    %234 = vmatpush.xpose.msra.mxu0 0.0
    %235 = vmatpush.xpose.msra.mxu0 0.0
    %236 = vmatpush.xpose.msra.mxu0 0.0
    %237 = vmatpush.xpose.msra.mxu0 0.0
    %238 = vmatpush.xpose.msra.mxu0 0.0
    %239 = vmatpush.xpose.msra.mxu0 0.0
    %240 = vmatpush.xpose.msra.mxu0 0.0
    %241 = vmatpush.xpose.msra.mxu0 0.0
    %242 = vmatpush.xpose.msra.mxu0 0.0
    %243 = vmatpush.xpose.msra.mxu0 %v226
    %244 = vmatmul.f32.gmra.mxu0 %v224
    %v245 = vpop.f32.mrf.mxu0
    %v246 = vadd.f32 0.0, %v245
    %247 = vdwg.mxu0
    %248 = vrot.lane.b32.xlu0 %v205, 96
    %v249 = vpop.permute.xlu0 %248
    %v250 = vsel %vm223, %v205, 0
    %v252 = vsel %vm223, %v249, 0
    %254 = vmatpush.xpose.msra.mxu0 0.0
    %255 = vmatpush.xpose.msra.mxu0 0.0
    %256 = vmatpush.xpose.msra.mxu0 0.0
    %257 = vmatpush.xpose.msra.mxu0 0.0
    %258 = vmatpush.xpose.msra.mxu0 0.0
    %259 = vmatpush.xpose.msra.mxu0 0.0
    %260 = vmatpush.xpose.msra.mxu0 0.0
    %261 = vmatpush.xpose.msra.mxu0 0.0
    %262 = vmatpush.xpose.msra.mxu0 0.0
    %263 = vmatpush.xpose.msra.mxu0 0.0
    %264 = vmatpush.xpose.msra.mxu0 0.0
    %265 = vmatpush.xpose.msra.mxu0 0.0
    %266 = vmatpush.xpose.msra.mxu0 0.0
    %267 = vmatpush.xpose.msra.mxu0 0.0
    %268 = vmatpush.xpose.msra.mxu0 0.0
    %269 = vmatpush.xpose.msra.mxu0 %v252
    %270 = vmatmul.f32.gmra.mxu0 %v250
    %v271 = vpop.f32.mrf.mxu0
    %v272 = vadd.f32 0.0, %v271
    %273 = vdwg.mxu0
    %274 = vrot.lane.b32.xlu0 %v210, 96
    %v275 = vpop.permute.xlu0 %274
    %v276 = vsel %vm223, %v210, 0
    %v278 = vsel %vm223, %v275, 0
    %280 = vmatpush.xpose.msra.mxu0 0.0
    %281 = vmatpush.xpose.msra.mxu0 0.0
    %282 = vmatpush.xpose.msra.mxu0 0.0
    %283 = vmatpush.xpose.msra.mxu0 0.0
    %284 = vmatpush.xpose.msra.mxu0 0.0
    %285 = vmatpush.xpose.msra.mxu0 0.0
    %286 = vmatpush.xpose.msra.mxu0 0.0
    %287 = vmatpush.xpose.msra.mxu0 0.0
    %288 = vmatpush.xpose.msra.mxu0 0.0
    %289 = vmatpush.xpose.msra.mxu0 0.0
    %290 = vmatpush.xpose.msra.mxu0 0.0
    %291 = vmatpush.xpose.msra.mxu0 0.0
    %292 = vmatpush.xpose.msra.mxu0 0.0
    %293 = vmatpush.xpose.msra.mxu0 0.0
    %294 = vmatpush.xpose.msra.mxu0 0.0
    %295 = vmatpush.xpose.msra.mxu0 %v278
    %296 = vmatmul.f32.gmra.mxu0 %v276
    %v297 = vpop.f32.mrf.mxu0
    %v298 = vadd.f32 0.0, %v297
    %299 = vdwg.mxu0
    %300 = vrot.lane.b32.xlu0 %v212, 96
    %v301 = vpop.permute.xlu0 %300
    %v302 = vsel %vm223, %v212, 0
    %v304 = vsel %vm223, %v301, 0
    %306 = vmatpush.xpose.msra.mxu0 0.0
    %307 = vmatpush.xpose.msra.mxu0 0.0
    %308 = vmatpush.xpose.msra.mxu0 0.0
    %309 = vmatpush.xpose.msra.mxu0 0.0
    %310 = vmatpush.xpose.msra.mxu0 0.0
    %311 = vmatpush.xpose.msra.mxu0 0.0
    %312 = vmatpush.xpose.msra.mxu0 0.0
    %313 = vmatpush.xpose.msra.mxu0 0.0
    %314 = vmatpush.xpose.msra.mxu0 0.0
    %315 = vmatpush.xpose.msra.mxu0 0.0
    %316 = vmatpush.xpose.msra.mxu0 0.0
    %317 = vmatpush.xpose.msra.mxu0 0.0
    %318 = vmatpush.xpose.msra.mxu0 0.0
    %319 = vmatpush.xpose.msra.mxu0 0.0
    %320 = vmatpush.xpose.msra.mxu0 0.0
    %321 = vmatpush.xpose.msra.mxu0 %v304
    %322 = vmatmul.f32.gmra.mxu0 %v302
    %v323 = vpop.f32.mrf.mxu0
    %v324 = vadd.f32 0.0, %v323
    %325 = vdwg.mxu0
    %326 = vrot.lane.b32.xlu0 %v214, 96
    %v327 = vpop.permute.xlu0 %326
    %v328 = vsel %vm223, %v214, 0
    %v330 = vsel %vm223, %v327, 0
    %332 = vmatpush.xpose.msra.mxu0 0.0
    %333 = vmatpush.xpose.msra.mxu0 0.0
    %334 = vmatpush.xpose.msra.mxu0 0.0
    %335 = vmatpush.xpose.msra.mxu0 0.0
    %336 = vmatpush.xpose.msra.mxu0 0.0
    %337 = vmatpush.xpose.msra.mxu0 0.0
    %338 = vmatpush.xpose.msra.mxu0 0.0
    %339 = vmatpush.xpose.msra.mxu0 0.0
    %340 = vmatpush.xpose.msra.mxu0 0.0
    %341 = vmatpush.xpose.msra.mxu0 0.0
    %342 = vmatpush.xpose.msra.mxu0 0.0
    %343 = vmatpush.xpose.msra.mxu0 0.0
    %344 = vmatpush.xpose.msra.mxu0 0.0
    %345 = vmatpush.xpose.msra.mxu0 0.0
    %346 = vmatpush.xpose.msra.mxu0 0.0
    %347 = vmatpush.xpose.msra.mxu0 %v330
    %348 = vmatmul.f32.gmra.mxu0 %v328
    %v349 = vpop.f32.mrf.mxu0
    %v350 = vadd.f32 0.0, %v349
    %351 = vdwg.mxu0
    %352 = vrot.lane.b32.xlu0 %v216, 96
    %v353 = vpop.permute.xlu0 %352
    %v354 = vsel %vm223, %v216, 0
    %v356 = vsel %vm223, %v353, 0
    %358 = vmatpush.xpose.msra.mxu0 0.0
    %359 = vmatpush.xpose.msra.mxu0 0.0
    %360 = vmatpush.xpose.msra.mxu0 0.0
    %361 = vmatpush.xpose.msra.mxu0 0.0
    %362 = vmatpush.xpose.msra.mxu0 0.0
    %363 = vmatpush.xpose.msra.mxu0 0.0
    %364 = vmatpush.xpose.msra.mxu0 0.0
    %365 = vmatpush.xpose.msra.mxu0 0.0
    %366 = vmatpush.xpose.msra.mxu0 0.0
    %367 = vmatpush.xpose.msra.mxu0 0.0
    %368 = vmatpush.xpose.msra.mxu0 0.0
    %369 = vmatpush.xpose.msra.mxu0 0.0
    %370 = vmatpush.xpose.msra.mxu0 0.0
    %371 = vmatpush.xpose.msra.mxu0 0.0
    %372 = vmatpush.xpose.msra.mxu0 0.0
    %373 = vmatpush.xpose.msra.mxu0 %v356
    %374 = vmatmul.f32.gmra.mxu0 %v354
    %v375 = vpop.f32.mrf.mxu0
    %v376 = vadd.f32 0.0, %v375
    %377 = vdwg.mxu0
    %378 = vrot.lane.b32.xlu0 %v218, 96
    %v379 = vpop.permute.xlu0 %378
    %v380 = vsel %vm223, %v218, 0
    %v382 = vsel %vm223, %v379, 0
    %384 = vmatpush.xpose.msra.mxu0 0.0
    %385 = vmatpush.xpose.msra.mxu0 0.0
    %386 = vmatpush.xpose.msra.mxu0 0.0
    %387 = vmatpush.xpose.msra.mxu0 0.0
    %388 = vmatpush.xpose.msra.mxu0 0.0
    %389 = vmatpush.xpose.msra.mxu0 0.0
    %390 = vmatpush.xpose.msra.mxu0 0.0
    %391 = vmatpush.xpose.msra.mxu0 0.0
    %392 = vmatpush.xpose.msra.mxu0 0.0
    %393 = vmatpush.xpose.msra.mxu0 0.0
    %394 = vmatpush.xpose.msra.mxu0 0.0
    %395 = vmatpush.xpose.msra.mxu0 0.0
    %396 = vmatpush.xpose.msra.mxu0 0.0
    %397 = vmatpush.xpose.msra.mxu0 0.0
    %398 = vmatpush.xpose.msra.mxu0 0.0
    %399 = vmatpush.xpose.msra.mxu0 %v382
    %400 = vmatmul.f32.gmra.mxu0 %v380
    %v401 = vpop.f32.mrf.mxu0
    %v402 = vadd.f32 0.0, %v401
    %403 = vdwg.mxu0
    %404 = vrot.lane.b32.xlu0 %v220, 96
    %v405 = vpop.permute.xlu0 %404
    %v406 = vsel %vm223, %v220, 0
    %v408 = vsel %vm223, %v405, 0
    %410 = vmatpush.xpose.msra.mxu0 0.0
    %411 = vmatpush.xpose.msra.mxu0 0.0
    %412 = vmatpush.xpose.msra.mxu0 0.0
    %413 = vmatpush.xpose.msra.mxu0 0.0
    %414 = vmatpush.xpose.msra.mxu0 0.0
    %415 = vmatpush.xpose.msra.mxu0 0.0
    %416 = vmatpush.xpose.msra.mxu0 0.0
    %417 = vmatpush.xpose.msra.mxu0 0.0
    %418 = vmatpush.xpose.msra.mxu0 0.0
    %419 = vmatpush.xpose.msra.mxu0 0.0
    %420 = vmatpush.xpose.msra.mxu0 0.0
    %421 = vmatpush.xpose.msra.mxu0 0.0
    %422 = vmatpush.xpose.msra.mxu0 0.0
    %423 = vmatpush.xpose.msra.mxu0 0.0
    %424 = vmatpush.xpose.msra.mxu0 0.0
    %425 = vmatpush.xpose.msra.mxu0 %v408
    %426 = vmatmul.f32.gmra.mxu0 %v406
    %v427 = vpop.f32.mrf.mxu0
    %v428 = vadd.f32 0.0, %v427
    %429 = vdwg.mxu0
    %v430 = vmul.f32 %v246, 0.35355338
    %v431 = vmul.f32 %v272, 0.35355338
    %v432 = vmul.f32 %v298, 0.35355338
    %v433 = vmul.f32 %v324, 0.35355338
    %v434 = vmul.f32 %v350, 0.35355338
    %v435 = vmul.f32 %v376, 0.35355338
    %v436 = vmul.f32 %v402, 0.35355338
    %v437 = vmul.f32 %v428, 0.35355338
    %vm438 = vcmp.eq.f32.partialorder %v64, 0.0
    %vm439 = vcmp.eq.f32.partialorder %v65, 0.0
    %v440 = vsel %vm438, 1, 0
    %v441 = vsel %vm439, 1, 0
    %v442 = vperm.slane %v440, 0
    %v443 = vperm.slane %v441, 0
    %vm444 = vcmp.eq.s32.totalorder %v442, 1
    %vm445 = vcmp.eq.s32.totalorder %v443, 1
    %v446 = vsel %vm444, -1e+09, %v430
    %v447 = vsel %vm445, -1e+09, %v431
    %v448 = vsel %vm444, -1e+09, %v432
    %v449 = vsel %vm445, -1e+09, %v433
    %v450 = vsel %vm444, -1e+09, %v434
    %v451 = vsel %vm445, -1e+09, %v435
    %v452 = vsel %vm444, -1e+09, %v436
    %v453 = vsel %vm445, -1e+09, %v437
    %v454 = vsel %vm223, %v446, -inf
    %455 = vmax.xlane.f32.xlu0 %v454
    %v456 = vpop.xlane.xlu0 %455
    %v457 = vsel %vm223, %v447, -inf
    %458 = vmax.xlane.f32.xlu0 %v457
    %v459 = vpop.xlane.xlu0 %458
    %v460 = vsel %vm223, %v448, -inf
    %461 = vmax.xlane.f32.xlu0 %v460
    %v462 = vpop.xlane.xlu0 %461
    %v463 = vsel %vm223, %v449, -inf
    %464 = vmax.xlane.f32.xlu0 %v463
    %v465 = vpop.xlane.xlu0 %464
    %v466 = vsel %vm223, %v450, -inf
    %467 = vmax.xlane.f32.xlu0 %v466
    %v468 = vpop.xlane.xlu0 %467
    %v469 = vsel %vm223, %v451, -inf
    %470 = vmax.xlane.f32.xlu0 %v469
    %v471 = vpop.xlane.xlu0 %470
    %v472 = vsel %vm223, %v452, -inf
    %473 = vmax.xlane.f32.xlu0 %v472
    %v474 = vpop.xlane.xlu0 %473
    %v475 = vsel %vm223, %v453, -inf
    %476 = vmax.xlane.f32.xlu0 %v475
    %v477 = vpop.xlane.xlu0 %476
    %v478 = vsub.f32 %v446, %v456
    %v479 = vsub.f32 %v447, %v459
    %v480 = vsub.f32 %v448, %v462
    %v481 = vsub.f32 %v449, %v465
    %v482 = vsub.f32 %v450, %v468
    %v483 = vsub.f32 %v451, %v471
    %v484 = vsub.f32 %v452, %v474
    %v485 = vsub.f32 %v453, %v477
    %v486 = vmul.f32 %v478, 1.442695
    %v487 = vpow.pop %v486
    %v488 = vmul.f32 %v479, 1.442695
    %v489 = vpow.pop %v488
    %v490 = vmul.f32 %v480, 1.442695
    %v491 = vpow.pop %v490
    %v492 = vmul.f32 %v481, 1.442695
    %v493 = vpow.pop %v492
    %v494 = vmul.f32 %v482, 1.442695
    %v495 = vpow.pop %v494
    %v496 = vmul.f32 %v483, 1.442695
    %v497 = vpow.pop %v496
    %v498 = vmul.f32 %v484, 1.442695
    %v499 = vpow.pop %v498
    %v500 = vmul.f32 %v485, 1.442695
    %v501 = vpow.pop %v500
    %v502 = vsel %vm223, %v487, 0.0
    %503 = vadd.xlane.f32.xlu0 %v502
    %v504 = vpop.xlane.xlu0 %503
    %v505 = vsel %vm223, %v489, 0.0
    %506 = vadd.xlane.f32.xlu0 %v505
    %v507 = vpop.xlane.xlu0 %506
    %v508 = vsel %vm223, %v491, 0.0
    %509 = vadd.xlane.f32.xlu0 %v508
    %v510 = vpop.xlane.xlu0 %509
    %v511 = vsel %vm223, %v493, 0.0
    %512 = vadd.xlane.f32.xlu0 %v511
    %v513 = vpop.xlane.xlu0 %512
    %v514 = vsel %vm223, %v495, 0.0
    %515 = vadd.xlane.f32.xlu0 %v514
    %v516 = vpop.xlane.xlu0 %515
    %v517 = vsel %vm223, %v497, 0.0
    %518 = vadd.xlane.f32.xlu0 %v517
    %v519 = vpop.xlane.xlu0 %518
    %v520 = vsel %vm223, %v499, 0.0
    %521 = vadd.xlane.f32.xlu0 %v520
    %v522 = vpop.xlane.xlu0 %521
    %v523 = vsel %vm223, %v501, 0.0
    %524 = vadd.xlane.f32.xlu0 %v523
    %v525 = vpop.xlane.xlu0 %524
    %v526 = vrcp.pop %v504
    %v527 = vmul.f32 %v504, %v526
    %v528 = vsub.f32 1.0, %v527
    %v529 = vmul.f32 %v526, %v528
    %v530 = vadd.f32 %v526, %v529
    %vm531 = vweird.f32 %v504
    %vm532 = vweird.f32 %v526
    %vm533 = vmor %vm531, %vm532
    %v534 = vsel %vm533, %v526, %v530
    %v535 = vand.u32 2147483647, %v504
    %vm536 = vcmp.eq.f32.partialorder %v535, 8.507059e+37
    %v537 = vand.u32 %v504, 2147483648
    %v538 = vor.u32 1.1754944e-38, %v537
    %v539 = vsel %vm536, %v538, %v534
    %v540 = vrcp.pop %v507
    %v541 = vmul.f32 %v507, %v540
    %v542 = vsub.f32 1.0, %v541
    %v543 = vmul.f32 %v540, %v542
    %v544 = vadd.f32 %v540, %v543
    %vm545 = vweird.f32 %v507
    %vm546 = vweird.f32 %v540
    %vm547 = vmor %vm545, %vm546
    %v548 = vsel %vm547, %v540, %v544
    %v549 = vand.u32 2147483647, %v507
    %vm550 = vcmp.eq.f32.partialorder %v549, 8.507059e+37
    %v551 = vand.u32 %v507, 2147483648
    %v552 = vor.u32 1.1754944e-38, %v551
    %v553 = vsel %vm550, %v552, %v548
    %v554 = vrcp.pop %v510
    %v555 = vmul.f32 %v510, %v554
    %v556 = vsub.f32 1.0, %v555
    %v557 = vmul.f32 %v554, %v556
    %v558 = vadd.f32 %v554, %v557
    %vm559 = vweird.f32 %v510
    %vm560 = vweird.f32 %v554
    %vm561 = vmor %vm559, %vm560
    %v562 = vsel %vm561, %v554, %v558
    %v563 = vand.u32 2147483647, %v510
    %vm564 = vcmp.eq.f32.partialorder %v563, 8.507059e+37
    %v565 = vand.u32 %v510, 2147483648
    %v566 = vor.u32 1.1754944e-38, %v565
    %v567 = vsel %vm564, %v566, %v562
    %v568 = vrcp.pop %v513
    %v569 = vmul.f32 %v513, %v568
    %v570 = vsub.f32 1.0, %v569
    %v571 = vmul.f32 %v568, %v570
    %v572 = vadd.f32 %v568, %v571
    %vm573 = vweird.f32 %v513
    %vm574 = vweird.f32 %v568
    %vm575 = vmor %vm573, %vm574
    %v576 = vsel %vm575, %v568, %v572
    %v577 = vand.u32 2147483647, %v513
    %vm578 = vcmp.eq.f32.partialorder %v577, 8.507059e+37
    %v579 = vand.u32 %v513, 2147483648
    %v580 = vor.u32 1.1754944e-38, %v579
    %v581 = vsel %vm578, %v580, %v576
    %v582 = vrcp.pop %v516
    %v583 = vmul.f32 %v516, %v582
    %v584 = vsub.f32 1.0, %v583
    %v585 = vmul.f32 %v582, %v584
    %v586 = vadd.f32 %v582, %v585
    %vm587 = vweird.f32 %v516
    %vm588 = vweird.f32 %v582
    %vm589 = vmor %vm587, %vm588
    %v590 = vsel %vm589, %v582, %v586
    %v591 = vand.u32 2147483647, %v516
    %vm592 = vcmp.eq.f32.partialorder %v591, 8.507059e+37
    %v593 = vand.u32 %v516, 2147483648
    %v594 = vor.u32 1.1754944e-38, %v593
    %v595 = vsel %vm592, %v594, %v590
    %v596 = vrcp.pop %v519
    %v597 = vmul.f32 %v519, %v596
    %v598 = vsub.f32 1.0, %v597
    %v599 = vmul.f32 %v596, %v598
    %v600 = vadd.f32 %v596, %v599
    %vm601 = vweird.f32 %v519
    %vm602 = vweird.f32 %v596
    %vm603 = vmor %vm601, %vm602
    %v604 = vsel %vm603, %v596, %v600
    %v605 = vand.u32 2147483647, %v519
    %vm606 = vcmp.eq.f32.partialorder %v605, 8.507059e+37
    %v607 = vand.u32 %v519, 2147483648
    %v608 = vor.u32 1.1754944e-38, %v607
    %v609 = vsel %vm606, %v608, %v604
    %v610 = vrcp.pop %v522
    %v611 = vmul.f32 %v522, %v610
    %v612 = vsub.f32 1.0, %v611
    %v613 = vmul.f32 %v610, %v612
    %v614 = vadd.f32 %v610, %v613
    %vm615 = vweird.f32 %v522
    %vm616 = vweird.f32 %v610
    %vm617 = vmor %vm615, %vm616
    %v618 = vsel %vm617, %v610, %v614
    %v619 = vand.u32 2147483647, %v522
    %vm620 = vcmp.eq.f32.partialorder %v619, 8.507059e+37
    %v621 = vand.u32 %v522, 2147483648
    %v622 = vor.u32 1.1754944e-38, %v621
    %v623 = vsel %vm620, %v622, %v618
    %v624 = vrcp.pop %v525
    %v625 = vmul.f32 %v525, %v624
    %v626 = vsub.f32 1.0, %v625
    %v627 = vmul.f32 %v624, %v626
    %v628 = vadd.f32 %v624, %v627
    %vm629 = vweird.f32 %v525
    %vm630 = vweird.f32 %v624
    %vm631 = vmor %vm629, %vm630
    %v632 = vsel %vm631, %v624, %v628
    %v633 = vand.u32 2147483647, %v525
    %vm634 = vcmp.eq.f32.partialorder %v633, 8.507059e+37
    %v635 = vand.u32 %v525, 2147483648
    %v636 = vor.u32 1.1754944e-38, %v635
    %v637 = vsel %vm634, %v636, %v632
    %v638 = vmul.f32 %v487, %v539
    %v639 = vmul.f32 %v489, %v553
    %v640 = vmul.f32 %v491, %v567
    %v641 = vmul.f32 %v493, %v581
    %v642 = vmul.f32 %v495, %v595
    %v643 = vmul.f32 %v497, %v609
    %v644 = vmul.f32 %v499, %v623
    %v645 = vmul.f32 %v501, %v637
    %646 = vrot.lane.b32.xlu0 %v202, 64
    %v647 = vpop.permute.xlu0 %646
    %v650 = vsel %vm223, %v638, 0
    %652 = vmatpush.msra.mxu0 0.0
    %653 = vmatpush.msra.mxu0 0.0
    %654 = vmatpush.msra.mxu0 0.0
    %655 = vmatpush.msra.mxu0 0.0
    %656 = vmatpush.msra.mxu0 0.0
    %657 = vmatpush.msra.mxu0 0.0
    %658 = vmatpush.msra.mxu0 0.0
    %659 = vmatpush.msra.mxu0 0.0
    %660 = vmatpush.msra.mxu0 0.0
    %661 = vmatpush.msra.mxu0 0.0
    %662 = vmatpush.msra.mxu0 0.0
    %663 = vmatpush.msra.mxu0 0.0
    %664 = vmatpush.msra.mxu0 0.0
    %665 = vmatpush.msra.mxu0 0.0
    %666 = vmatpush.msra.mxu0 0.0
    %667 = vmatpush.msra.mxu0 %v647
    %668 = vmatmul.f32.gmra.mxu0 %v650
    %v669 = vpop.f32.mrf.mxu0
    %v670 = vadd.f32 0.0, %v669
    %671 = vdwg.mxu0
    %672 = vrot.lane.b32.xlu0 %v205, 64
    %v673 = vpop.permute.xlu0 %672
    %v676 = vsel %vm223, %v639, 0
    %678 = vmatpush.msra.mxu0 0.0
    %679 = vmatpush.msra.mxu0 0.0
    %680 = vmatpush.msra.mxu0 0.0
    %681 = vmatpush.msra.mxu0 0.0
    %682 = vmatpush.msra.mxu0 0.0
    %683 = vmatpush.msra.mxu0 0.0
    %684 = vmatpush.msra.mxu0 0.0
    %685 = vmatpush.msra.mxu0 0.0
    %686 = vmatpush.msra.mxu0 0.0
    %687 = vmatpush.msra.mxu0 0.0
    %688 = vmatpush.msra.mxu0 0.0
    %689 = vmatpush.msra.mxu0 0.0
    %690 = vmatpush.msra.mxu0 0.0
    %691 = vmatpush.msra.mxu0 0.0
    %692 = vmatpush.msra.mxu0 0.0
    %693 = vmatpush.msra.mxu0 %v673
    %694 = vmatmul.f32.gmra.mxu0 %v676
    %v695 = vpop.f32.mrf.mxu0
    %v696 = vadd.f32 0.0, %v695
    %697 = vdwg.mxu0
    %698 = vrot.lane.b32.xlu0 %v210, 64
    %v699 = vpop.permute.xlu0 %698
    %v702 = vsel %vm223, %v640, 0
    %704 = vmatpush.msra.mxu0 0.0
    %705 = vmatpush.msra.mxu0 0.0
    %706 = vmatpush.msra.mxu0 0.0
    %707 = vmatpush.msra.mxu0 0.0
    %708 = vmatpush.msra.mxu0 0.0
    %709 = vmatpush.msra.mxu0 0.0
    %710 = vmatpush.msra.mxu0 0.0
    %711 = vmatpush.msra.mxu0 0.0
    %712 = vmatpush.msra.mxu0 0.0
    %713 = vmatpush.msra.mxu0 0.0
    %714 = vmatpush.msra.mxu0 0.0
    %715 = vmatpush.msra.mxu0 0.0
    %716 = vmatpush.msra.mxu0 0.0
    %717 = vmatpush.msra.mxu0 0.0
    %718 = vmatpush.msra.mxu0 0.0
    %719 = vmatpush.msra.mxu0 %v699
    %720 = vmatmul.f32.gmra.mxu0 %v702
    %v721 = vpop.f32.mrf.mxu0
    %v722 = vadd.f32 0.0, %v721
    %723 = vdwg.mxu0
    %724 = vrot.lane.b32.xlu0 %v212, 64
    %v725 = vpop.permute.xlu0 %724
    %v728 = vsel %vm223, %v641, 0
    %730 = vmatpush.msra.mxu0 0.0
    %731 = vmatpush.msra.mxu0 0.0
    %732 = vmatpush.msra.mxu0 0.0
    %733 = vmatpush.msra.mxu0 0.0
    %734 = vmatpush.msra.mxu0 0.0
    %735 = vmatpush.msra.mxu0 0.0
    %736 = vmatpush.msra.mxu0 0.0
    %737 = vmatpush.msra.mxu0 0.0
    %738 = vmatpush.msra.mxu0 0.0
    %739 = vmatpush.msra.mxu0 0.0
    %740 = vmatpush.msra.mxu0 0.0
    %741 = vmatpush.msra.mxu0 0.0
    %742 = vmatpush.msra.mxu0 0.0
    %743 = vmatpush.msra.mxu0 0.0
    %744 = vmatpush.msra.mxu0 0.0
    %745 = vmatpush.msra.mxu0 %v725
    %746 = vmatmul.f32.gmra.mxu0 %v728
    %v747 = vpop.f32.mrf.mxu0
    %v748 = vadd.f32 0.0, %v747
    %749 = vdwg.mxu0
    %750 = vrot.lane.b32.xlu0 %v214, 64
    %v751 = vpop.permute.xlu0 %750
    %v754 = vsel %vm223, %v642, 0
    %756 = vmatpush.msra.mxu0 0.0
    %757 = vmatpush.msra.mxu0 0.0
    %758 = vmatpush.msra.mxu0 0.0
    %759 = vmatpush.msra.mxu0 0.0
    %760 = vmatpush.msra.mxu0 0.0
    %761 = vmatpush.msra.mxu0 0.0
    %762 = vmatpush.msra.mxu0 0.0
    %763 = vmatpush.msra.mxu0 0.0
    %764 = vmatpush.msra.mxu0 0.0
    %765 = vmatpush.msra.mxu0 0.0
    %766 = vmatpush.msra.mxu0 0.0
    %767 = vmatpush.msra.mxu0 0.0
    %768 = vmatpush.msra.mxu0 0.0
    %769 = vmatpush.msra.mxu0 0.0
    %770 = vmatpush.msra.mxu0 0.0
    %771 = vmatpush.msra.mxu0 %v751
    %772 = vmatmul.f32.gmra.mxu0 %v754
    %v773 = vpop.f32.mrf.mxu0
    %v774 = vadd.f32 0.0, %v773
    %775 = vdwg.mxu0
    %776 = vrot.lane.b32.xlu0 %v216, 64
    %v777 = vpop.permute.xlu0 %776
    %v780 = vsel %vm223, %v643, 0
    %782 = vmatpush.msra.mxu0 0.0
    %783 = vmatpush.msra.mxu0 0.0
    %784 = vmatpush.msra.mxu0 0.0
    %785 = vmatpush.msra.mxu0 0.0
    %786 = vmatpush.msra.mxu0 0.0
    %787 = vmatpush.msra.mxu0 0.0
    %788 = vmatpush.msra.mxu0 0.0
    %789 = vmatpush.msra.mxu0 0.0
    %790 = vmatpush.msra.mxu0 0.0
    %791 = vmatpush.msra.mxu0 0.0
    %792 = vmatpush.msra.mxu0 0.0
    %793 = vmatpush.msra.mxu0 0.0
    %794 = vmatpush.msra.mxu0 0.0
    %795 = vmatpush.msra.mxu0 0.0
    %796 = vmatpush.msra.mxu0 0.0
    %797 = vmatpush.msra.mxu0 %v777
    %798 = vmatmul.f32.gmra.mxu0 %v780
    %v799 = vpop.f32.mrf.mxu0
    %v800 = vadd.f32 0.0, %v799
    %801 = vdwg.mxu0
    %802 = vrot.lane.b32.xlu0 %v218, 64
    %v803 = vpop.permute.xlu0 %802
    %v806 = vsel %vm223, %v644, 0
    %808 = vmatpush.msra.mxu0 0.0
    %809 = vmatpush.msra.mxu0 0.0
    %810 = vmatpush.msra.mxu0 0.0
    %811 = vmatpush.msra.mxu0 0.0
    %812 = vmatpush.msra.mxu0 0.0
    %813 = vmatpush.msra.mxu0 0.0
    %814 = vmatpush.msra.mxu0 0.0
    %815 = vmatpush.msra.mxu0 0.0
    %816 = vmatpush.msra.mxu0 0.0
    %817 = vmatpush.msra.mxu0 0.0
    %818 = vmatpush.msra.mxu0 0.0
    %819 = vmatpush.msra.mxu0 0.0
    %820 = vmatpush.msra.mxu0 0.0
    %821 = vmatpush.msra.mxu0 0.0
    %822 = vmatpush.msra.mxu0 0.0
    %823 = vmatpush.msra.mxu0 %v803
    %824 = vmatmul.f32.gmra.mxu0 %v806
    %v825 = vpop.f32.mrf.mxu0
    %v826 = vadd.f32 0.0, %v825
    %827 = vdwg.mxu0
    %828 = vrot.lane.b32.xlu0 %v220, 64
    %v829 = vpop.permute.xlu0 %828
    %v832 = vsel %vm223, %v645, 0
    %834 = vmatpush.msra.mxu0 0.0
    %835 = vmatpush.msra.mxu0 0.0
    %836 = vmatpush.msra.mxu0 0.0
    %837 = vmatpush.msra.mxu0 0.0
    %838 = vmatpush.msra.mxu0 0.0
    %839 = vmatpush.msra.mxu0 0.0
    %840 = vmatpush.msra.mxu0 0.0
    %841 = vmatpush.msra.mxu0 0.0
    %842 = vmatpush.msra.mxu0 0.0
    %843 = vmatpush.msra.mxu0 0.0
    %844 = vmatpush.msra.mxu0 0.0
    %845 = vmatpush.msra.mxu0 0.0
    %846 = vmatpush.msra.mxu0 0.0
    %847 = vmatpush.msra.mxu0 0.0
    %848 = vmatpush.msra.mxu0 0.0
    %849 = vmatpush.msra.mxu0 %v829
    %850 = vmatmul.f32.gmra.mxu0 %v832
    %v851 = vpop.f32.mrf.mxu0
    %v852 = vadd.f32 0.0, %v851
    %853 = vdwg.mxu0
    %854 = vst.msk [vmem:[#allocation2] sm:$0xff] %vm223, %v670
    %855 = vst.msk [vmem:[#allocation2 + $0x8] sm:$0xff] %vm223, %v696
    %858 = vrot.lane.b32.xlu0 %v722, 8
    %v859 = vpop.permute.xlu0 %858
    %860 = vrot.lane.b32.xlu0 %v748, 8
    %v861 = vpop.permute.xlu0 %860
    %vm864 = vcmask 130112
    %865 = vst.msk [vmem:[#allocation2] sm:$0xff] %vm864, %v859
    %866 = vst.msk [vmem:[#allocation2 + $0x8] sm:$0xff] %vm864, %v861
    %869 = vrot.lane.b32.xlu0 %v774, 16
    %v870 = vpop.permute.xlu0 %869
    %871 = vrot.lane.b32.xlu0 %v800, 16
    %v872 = vpop.permute.xlu0 %871
    %vm875 = vcmask 195712
    %876 = vst.msk [vmem:[#allocation2] sm:$0xff] %vm875, %v870
    %877 = vst.msk [vmem:[#allocation2 + $0x8] sm:$0xff] %vm875, %v872
    %880 = vrot.lane.b32.xlu0 %v826, 24
    %v881 = vpop.permute.xlu0 %880
    %882 = vrot.lane.b32.xlu0 %v852, 24
    %v883 = vpop.permute.xlu0 %882
    %vm886 = vcmask 261312
    %887 = vst.msk [vmem:[#allocation2] sm:$0xff] %vm886, %v881
    %888 = vst.msk [vmem:[#allocation2 + $0x8] sm:$0xff] %vm886, %v883
    %v889 = vld [vmem:[#allocation2] sm:$0xff]
    %v890 = vld [vmem:[#allocation2 + $0x8] sm:$0xff]
    %v891 = vperm.slane %v86, 6
    %v893 = vsel %vm87, %v889, 0
    %v896 = vsel %vm87, %v890, 0
    %898 = vmatpush.msra.mxu0 0.0
    %899 = vmatpush.msra.mxu0 0.0
    %900 = vmatpush.msra.mxu0 0.0
    %901 = vmatpush.msra.mxu0 0.0
    %902 = vmatpush.msra.mxu0 0.0
    %903 = vmatpush.msra.mxu0 0.0
    %904 = vmatpush.msra.mxu0 0.0
    %905 = vmatpush.msra.mxu0 0.0
    %906 = vmatpush.msra.mxu0 0.0
    %907 = vmatpush.msra.mxu0 0.0
    %908 = vmatpush.msra.mxu0 0.0
    %909 = vmatpush.msra.mxu0 0.0
    %910 = vmatpush.msra.mxu0 %v85
    %911 = vmatpush.msra.mxu0 %v84
    %912 = vmatpush.msra.mxu0 %v83
    %913 = vmatpush.msra.mxu0 %v82
    %914 = vmatmul.f32.gmra.mxu0 %v893
    %v915 = vpop.f32.mrf.mxu0
    %v916 = vadd.f32 %v891, %v915
    %917 = vmatmul.f32.gmra.mxu0 %v896
    %v918 = vpop.f32.mrf.mxu0
    %v919 = vadd.f32 %v891, %v918
    %920 = vdwg.mxu0
    %v921 = vadd.f32 %v62, %v916
    %v922 = vadd.f32 %v63, %v919
    %v923 = vsel %vm87, %v921, 0.0
    %924 = vadd.xlane.f32.xlu0 %v923
    %v925 = vpop.xlane.xlu0 %924
    %v926 = vsel %vm87, %v922, 0.0
    %927 = vadd.xlane.f32.xlu0 %v926
    %v928 = vpop.xlane.xlu0 %927
    %v929 = vmul.f32 %v925, %v100
    %v930 = vmul.f32 %v928, %v100
    %v931 = vsub.f32 %v921, %v929
    %v932 = vsub.f32 %v922, %v930
    %v933 = vmul.f32 %v931, %v931
    %v934 = vmul.f32 %v932, %v932
    %v935 = vsel %vm87, %v933, 0.0
    %936 = vadd.xlane.f32.xlu0 %v935
    %v937 = vpop.xlane.xlu0 %936
    %v938 = vsel %vm87, %v934, 0.0
    %939 = vadd.xlane.f32.xlu0 %v938
    %v940 = vpop.xlane.xlu0 %939
    %v941 = vmul.f32 %v937, 0.032258064
    %v942 = vmul.f32 %v940, 0.032258064
    %v943 = vrsqrt.pop %v941
    %v944 = vmul.f32 %v943, %v941
    %v945 = vmul.f32 %v944, %v943
    %v946 = vmul.f32 0.5, %v945
    %v947 = vsub.f32 1.5, %v946
    %v948 = vmul.f32 %v943, %v947
    %v949 = vmul.f32 %v941, %v948
    %vm950 = vcmp.eq.f32.partialorder %v941, inf
    %v951 = vsel %vm950, %v941, %v949
    %vm952 = vcmp.eq.f32.partialorder %v941, 0.0
    %v953 = vand.u32 %v941, 2147483648
    %v954 = vsel %vm952, %v953, %v951
    %v955 = vrsqrt.pop %v942
    %v956 = vmul.f32 %v955, %v942
    %v957 = vmul.f32 %v956, %v955
    %v958 = vmul.f32 0.5, %v957
    %v959 = vsub.f32 1.5, %v958
    %v960 = vmul.f32 %v955, %v959
    %v961 = vmul.f32 %v942, %v960
    %vm962 = vcmp.eq.f32.partialorder %v942, inf
    %v963 = vsel %vm962, %v942, %v961
    %vm964 = vcmp.eq.f32.partialorder %v942, 0.0
    %v965 = vand.u32 %v942, 2147483648
    %v966 = vsel %vm964, %v965, %v963
    %v967 = vperm.slane %v86, 4
    %v968 = vmul.f32 %v967, %v931
    %v969 = vmul.f32 %v967, %v932
    %v970 = vadd.f32 %v954, 1e-06
    %v971 = vadd.f32 %v966, 1e-06
    %v972 = vrcp.pop %v970
    %v973 = vmul.f32 %v970, %v972
    %v974 = vsub.f32 1.0, %v973
    %v975 = vmul.f32 %v972, %v974
    %v976 = vadd.f32 %v972, %v975
    %vm977 = vweird.f32 %v970
    %vm978 = vweird.f32 %v972
    %vm979 = vmor %vm977, %vm978
    %v980 = vsel %vm979, %v972, %v976
    %v981 = vand.u32 2147483647, %v970
    %vm982 = vcmp.eq.f32.partialorder %v981, 8.507059e+37
    %v983 = vand.u32 %v970, 2147483648
    %v984 = vor.u32 1.1754944e-38, %v983
    %v985 = vsel %vm982, %v984, %v980
    %v986 = vrcp.pop %v971
    %v987 = vmul.f32 %v971, %v986
    %v988 = vsub.f32 1.0, %v987
    %v989 = vmul.f32 %v986, %v988
    %v990 = vadd.f32 %v986, %v989
    %vm991 = vweird.f32 %v971
    %vm992 = vweird.f32 %v986
    %vm993 = vmor %vm991, %vm992
    %v994 = vsel %vm993, %v986, %v990
    %v995 = vand.u32 2147483647, %v971
    %vm996 = vcmp.eq.f32.partialorder %v995, 8.507059e+37
    %v997 = vand.u32 %v971, 2147483648
    %v998 = vor.u32 1.1754944e-38, %v997
    %v999 = vsel %vm996, %v998, %v994
    %v1000 = vmul.f32 %v968, %v985
    %v1001 = vmul.f32 %v969, %v999
    %v1002 = vperm.slane %v86, 5
    %v1003 = vadd.f32 %v1000, %v1002
    %v1004 = vadd.f32 %v1001, %v1002
    %v1005 = vperm.slane %v86, 1
    %v1007 = vsel %vm87, %v1003, 0
    %v1010 = vsel %vm87, %v1004, 0
    %1012 = vmatpush.msra.mxu0 0.0
    %1013 = vmatpush.msra.mxu0 0.0
    %1014 = vmatpush.msra.mxu0 0.0
    %1015 = vmatpush.msra.mxu0 0.0
    %1016 = vmatpush.msra.mxu0 0.0
    %1017 = vmatpush.msra.mxu0 0.0
    %1018 = vmatpush.msra.mxu0 0.0
    %1019 = vmatpush.msra.mxu0 0.0
    %1020 = vmatpush.msra.mxu0 0.0
    %1021 = vmatpush.msra.mxu0 0.0
    %1022 = vmatpush.msra.mxu0 0.0
    %1023 = vmatpush.msra.mxu0 0.0
    %1024 = vmatpush.msra.mxu0 %v73
    %1025 = vmatpush.msra.mxu0 %v72
    %1026 = vmatpush.msra.mxu0 %v71
    %1027 = vmatpush.msra.mxu0 %v70
    %1028 = vmatmul.f32.gmra.mxu0 %v1007
    %v1029 = vpop.f32.mrf.mxu0
    %v1030 = vadd.f32 %v1005, %v1029
    %1031 = vmatmul.f32.gmra.mxu0 %v1010
    %v1032 = vpop.f32.mrf.mxu0
    %v1033 = vadd.f32 %v1005, %v1032
    %1034 = vdwg.mxu0
    %v1035 = vmax.f32 %v1030, 0.0
    %v1036 = vmax.f32 %v1033, 0.0
    %v1037 = vperm.slane %v86, 7
    %vm1038 = vcmask 523264
    %v1040 = vsel %vm1038, %v1035, 0
    %v1043 = vsel %vm1038, %v1036, 0
    %1045 = vmatpush.msra.mxu0 0.0
    %1046 = vmatpush.msra.mxu0 0.0
    %1047 = vmatpush.msra.mxu0 0.0
    %1048 = vmatpush.msra.mxu0 0.0
    %1049 = vmatpush.msra.mxu0 0.0
    %1050 = vmatpush.msra.mxu0 0.0
    %1051 = vmatpush.msra.mxu0 0.0
    %1052 = vmatpush.msra.mxu0 0.0
    %1053 = vmatpush.msra.mxu0 %v81
    %1054 = vmatpush.msra.mxu0 %v80
    %1055 = vmatpush.msra.mxu0 %v79
    %1056 = vmatpush.msra.mxu0 %v78
    %1057 = vmatpush.msra.mxu0 %v77
    %1058 = vmatpush.msra.mxu0 %v76
    %1059 = vmatpush.msra.mxu0 %v75
    %1060 = vmatpush.msra.mxu0 %v74
    %1061 = vmatmul.f32.gmra.mxu0 %v1040
    %v1062 = vpop.f32.mrf.mxu0
    %v1063 = vadd.f32 %v1037, %v1062
    %1064 = vmatmul.f32.gmra.mxu0 %v1043
    %v1065 = vpop.f32.mrf.mxu0
    %v1066 = vadd.f32 %v1037, %v1065
    %1067 = vdwg.mxu0
    %v1068 = vadd.f32 %v921, %v1063
    %v1069 = vadd.f32 %v922, %v1066
    %1070 = vst.msk [vmem:[#allocation9] sm:$0xff] %vm87, %v1068
    %1071 = vst.msk [vmem:[#allocation9 + $0x8] sm:$0xff] %vm87, %v1069
    // Predicated region
    $region26: #{tpu_custom_call.1} parent=1 // pred_check
      _
    $region27: #{tpu_custom_call.1} parent=1 // pred_check_branch
      %1073 = sbr.rel (0) target = $region29
    $region28: #{tpu_custom_call.1} parent=1 // pred_region
      %1075 = vsyncadd [#allocation5], 0
      %s1076 = sshll.u32 [#allocation9], 4
      %s1077 = int_to_ptr.vmem [resolvable:$true] %s1076
      %s1078 = sshll.u32 %s3, 4
      %s1079 = int_to_ptr.hbm [resolvable:$true] %s1078
      %1084 = dma.vmem_to_hbm [thread:$0]  %s1077, 256, %s1079, [#allocation5], 128, 128, 8
    $region29: #{tpu_custom_call.1} parent=1 // pred_fallthru
      _
    // Predicated region
    $region30: #{tpu_custom_call.1} parent=1 // pred_check
      _
    $region31: #{tpu_custom_call.1} parent=1 // pred_check_branch
      %1086 = sbr.rel (0) target = $region33
    $region32: #{tpu_custom_call.1} parent=1 // pred_region
      %1088 = dma.done [#allocation5], 256
    $region33: #{tpu_custom_call.1} parent=1 // pred_fallthru
      _
    %1089 = vsyncpa [#allocation4], 1
    %1090 = vsyncpa [#allocation7], 1
    %1091 = vsyncpa [#allocation5], 1

</llo_original>
